<compile_context>
chip_gen: v6e
topology: v6e:2x2x1
jax: 0.10.0
libtpu: 0.0.40
codegen_flags: <defaults>
</compile_context>

<pallas_src>
import functools
import math

import jax
import jax.numpy as jnp
from jax.experimental import pallas as pl
from jax.experimental.pallas import tpu as pltpu


def _cdiv(a: int, b: int) -> int:
    return -(-a // b)


def _detect_num_tensorcores() -> int:
    """Best-effort TensorCore count (v7x: 2, v5e/v6e: 1). Safe fallback = 1."""
    try:
        info = pltpu.get_tpu_info()
        for attr in ("num_tensorcores", "tensorcore_count", "num_cores", "core_count"):
            v = getattr(info, attr, None)
            if isinstance(v, int) and 1 <= v <= 8:
                return v
    except Exception:
        pass
    return 1


def _pick_lanes(n: int, quantum: int):
    """Widest lane count that leaves >= 1 quantum-aligned row group.

    Prefers a lane count that divides n exactly (zero-copy reshape).
    Returns None for degenerate tiny inputs (pure-JAX fallback).
    """
    fitting = [c for c in (1024, 512, 256, 128) if n >= c * quantum]
    if not fitting:
        return None
    for c in fitting:
        if n % c == 0:
            return c
    return fitting[0]


def _vae_loss_kernel(x_ref, xhat_ref, mu_ref, logvar_ref,
                     rec_part_ref, kl_part_ref, acc_ref,
                     *, rows_total, tile_rows, steps, needs_mask):
    p = pl.program_id(0)          # shard (TensorCore) axis
    i = pl.program_id(1)          # reduction-step axis
    lanes = acc_ref.shape[-1]
    groups = tile_rows // 8

    # Start of this shard's sweep: zero the running (8, lanes) accumulator.
    @pl.when(i == 0)
    def _init():
        acc_ref[...] = jnp.zeros_like(acc_ref)

    # Upcast only inside the kernel -> bf16/fp8 inputs stream half (or 1/4) the
    # HBM bytes for free.
    x = x_ref[...].astype(jnp.float32)
    xh = xhat_ref[...].astype(jnp.float32)
    d = xh - x

    def _accum(dd):
        # Fold row-groups with full-vreg VALU adds into the (8, lanes)
        # accumulator; the sublane/cross-lane (XLU) reduce is deferred to the
        # once-per-shard epilogue so the hot loop stays DMA-bound on v7x.
        acc_ref[...] += dd.reshape(groups, 8, lanes).sum(axis=0)

    if needs_mask:
        # Ragged tail handled in-kernel (no wrapper-side padding). rows_total,
        # tile_rows, steps are static; only program ids are runtime scalars.
        row0 = (p * steps + i) * tile_rows
        full = row0 + tile_rows <= rows_total

        @pl.when(full)
        def _fast():
            _accum(d * d)

        @pl.when(jnp.logical_not(full))
        def _masked():
            # Mask BEFORE squaring: out-of-bounds rows of a partial block hold
            # unspecified (possibly NaN) data.
            rid = row0 + jax.lax.broadcasted_iota(jnp.int32, d.shape, 0)
            dm = jnp.where(rid < rows_total, d, 0.0)
            _accum(dm * dm)
    else:
        _accum(d * d)

    # Epilogue (once per shard): final XLU reduce + tiny KL on the resident
    # mu/logvar blocks. Outputs are full (8,128) blocks -> unmasked stores.
    @pl.when(i == steps - 1)
    def _finalize():
        sse = jnp.sum(acc_ref[...])
        rec_part_ref[...] = jnp.broadcast_to(sse, rec_part_ref.shape)

        mu = mu_ref[...].astype(jnp.float32)
        lv = logvar_ref[...].astype(jnp.float32)
        kl = -0.5 * jnp.sum(1.0 + lv - mu * mu - jnp.exp(lv))
        # Only shard 0 reports KL so the wrapper may safely sum over shards.
        kl = jnp.where(p == 0, kl, 0.0)
        kl_part_ref[...] = jnp.broadcast_to(kl, kl_part_ref.shape)


def vae_loss(x, x_hat, mu, logvar, *, tile_rows=1024, nshards=None):
    """Pallas implementation of VAELoss.forward.

    Args:
        x:      (B, C, H, W) input data (any float dtype; reduced in f32)
        x_hat:  (B, C, H, W) reconstruction
        mu:     (B, LATENT)  predicted mean
        logvar: (B, LATENT)  predicted log-variance

    Returns:
        (total_loss, reconstruction_loss, kl_divergence) f32 scalars, same
        order as the PyTorch module.
    """
    assert x.shape == x_hat.shape
    n = math.prod(x.shape)

    if nshards is None:
        nshards = _detect_num_tensorcores()
    nshards = max(1, int(nshards))

    # Sublane quantum of the narrowest streamed dtype: f32->8, bf16->16, i8/fp8->32.
    itemsize = min(jnp.dtype(x.dtype).itemsize, jnp.dtype(x_hat.dtype).itemsize)
    quantum = max(8, 32 // max(1, int(itemsize)))

    lanes = _pick_lanes(n, quantum)

    if lanes is None:
        # Degenerate tiny input: a kernel launch isn't worth it.
        xd = x_hat.astype(jnp.float32) - x.astype(jnp.float32)
        rec = jnp.sum(xd * xd)
        muf = mu.astype(jnp.float32)
        lvf = logvar.astype(jnp.float32)
        kl = -0.5 * jnp.sum(1.0 + lvf - muf * muf - jnp.exp(lvf))
        return rec + kl, rec, kl

    rows_all = n // lanes
    rows_main = (rows_all // quantum) * quantum     # kernel-processed rows (quantum-aligned)
    main = rows_main * lanes                        # kernel-processed elements
    tail = n - main                                 # < (quantum+1)*lanes elements; JAX handles it

    # Tile sizing: biggest that fits, quantum-aligned, never larger than the data.
    tile_rows = max(quantum, min(int(tile_rows), rows_main))
    tile_rows = max(quantum, (tile_rows // quantum) * quantum)
    nblocks = _cdiv(rows_main, tile_rows)
    nshards = min(nshards, nblocks)
    steps = _cdiv(nblocks, nshards)
    needs_mask = (nshards * steps * tile_rows != rows_main)

    def _main2d(a):
        flat = a.reshape(-1)
        if main != n:
            # Rare unaligned case (n not divisible by 128): slice the aligned
            # prefix (tiny tail goes to plain JAX below). No full-tensor pad.
            flat = flat[:main]
        return flat.reshape(rows_main, lanes)       # free reshape when main == n

    x2 = _main2d(x)
    xh2 = _main2d(x_hat)
    mu2 = mu.reshape(1, -1)
    lv2 = logvar.reshape(1, -1)

    last_block = nblocks - 1
    clamp_needed = (nshards * steps != nblocks)

    def _in_map(p, i):
        b = p * steps + i
        if clamp_needed:
            # Keep every DMA start in-bounds; fully-OOB blocks are re-reads of
            # the last block and contribute 0 via the in-kernel mask.
            b = jnp.minimum(b, last_block)
        return (b, 0)

    part_shape = jax.ShapeDtypeStruct((nshards, 8, 128), jnp.float32)

    in_bytes = (x2.size * x2.dtype.itemsize + xh2.size * xh2.dtype.itemsize
                + mu2.size * mu2.dtype.itemsize + lv2.size * lv2.dtype.itemsize)
    out_bytes = 2 * nshards * 8 * 128 * 4
    cost = pl.CostEstimate(
        flops=3 * main + 5 * mu2.size,
        transcendentals=lv2.size,
        bytes_accessed=in_bytes + out_bytes,
    )

    shard_sem = pltpu.CORE_PARALLEL if nshards > 1 else pltpu.ARBITRARY
    cparams = pltpu.CompilerParams(
        dimension_semantics=(shard_sem, pltpu.ARBITRARY),
        vmem_limit_bytes=32 * 1024 * 1024,
    )

    kernel = functools.partial(
        _vae_loss_kernel,
        rows_total=rows_main, tile_rows=tile_rows, steps=steps,
        needs_mask=needs_mask)

    rec_parts, kl_parts = pl.pallas_call(
        kernel,
        out_shape=(part_shape, part_shape),
        grid=(nshards, steps),
        in_specs=[
            pl.BlockSpec((tile_rows, lanes), _in_map),
            pl.BlockSpec((tile_rows, lanes), _in_map),
            # mu/logvar: full-array blocks, constant index -> fetched once,
            # grid-resident (no per-step re-DMA).
            pl.BlockSpec(mu2.shape, lambda p, i: (0, 0)),
            pl.BlockSpec(lv2.shape, lambda p, i: (0, 0)),
        ],
        out_specs=(
            pl.BlockSpec((1, 8, 128), lambda p, i: (p, 0, 0)),
            pl.BlockSpec((1, 8, 128), lambda p, i: (p, 0, 0)),
        ),
        scratch_shapes=[pltpu.VMEM((8, lanes), jnp.float32)],
        compiler_params=cparams,
        cost_estimate=cost,
    )(x2, xh2, mu2, lv2)

    rec = jnp.sum(rec_parts[:, 0, 0])
    kl = jnp.sum(kl_parts[:, 0, 0])

    if tail:
        tx = x.reshape(-1)[main:].astype(jnp.float32)
        txh = x_hat.reshape(-1)[main:].astype(jnp.float32)
        rec = rec + jnp.sum((txh - tx) ** 2)

    total = rec + kl
    return total, rec, kl


if __name__ == "__main__":
    key = jax.random.PRNGKey(0)
    k1, k2, k3, k4 = jax.random.split(key, 4)

    B, C, H, W = 2, 4, 16, 16
    LATENT = 32

    x = jax.random.normal(k1, (B, C, H, W), dtype=jnp.float32)
    x_hat = jax.random.normal(k2, (B, C, H, W), dtype=jnp.float32)
    mu = jax.random.normal(k3, (B, LATENT), dtype=jnp.float32)
    logvar = 0.1 * jax.random.normal(k4, (B, LATENT), dtype=jnp.float32)

    fn = jax.jit(vae_loss)
    total, rec, kl = fn(x, x_hat, mu, logvar)
    jax.block_until_ready((total, rec, kl))

    # Reference check (plain JAX) to verify semantics match the PyTorch module.
    rec_ref = jnp.sum((x_hat - x) ** 2)
    kl_ref = -0.5 * jnp.sum(1.0 + logvar - mu ** 2 - jnp.exp(logvar))
    tot_ref = rec_ref + kl_ref
    assert jnp.allclose(rec, rec_ref, rtol=1e-5, atol=1e-4)
    assert jnp.allclose(kl, kl_ref, rtol=1e-5, atol=1e-4)
    assert jnp.allclose(total, tot_ref, rtol=1e-5, atol=1e-4)

    print("KERNEL_OK")
</pallas_src>

<mosaic_0001>
module attributes {stable_mosaic.version = 11 : i64} {
  func.func @_vae_loss_kernel(%arg0: i32, %arg1: i32, %arg2: memref<8x256xf32, #tpu.memory_space<vmem>>, %arg3: memref<8x256xf32, #tpu.memory_space<vmem>>, %arg4: memref<1x64xf32, #tpu.memory_space<vmem>>, %arg5: memref<1x64xf32, #tpu.memory_space<vmem>>, %arg6: memref<1x8x128xf32, #tpu.memory_space<vmem>>, %arg7: memref<1x8x128xf32, #tpu.memory_space<vmem>>, %arg8: memref<8x256xf32, #tpu.memory_space<vmem>>) attributes {dimension_semantics = [#tpu.dimension_semantics<arbitrary>, #tpu.dimension_semantics<arbitrary>], iteration_bounds = array<i64: 1, 1>, scalar_prefetch = 0 : i64, scratch_operands = 1 : i64, tpu.core_type = #tpu.core_type<tc>, window_params = [{transform_indices = @transform_0, window_bounds = array<i64: 8, 256>}, {transform_indices = @transform_1, window_bounds = array<i64: 8, 256>}, {pipeline_mode = #tpu.pipeline_mode<synchronous>, transform_indices = @transform_2, window_bounds = array<i64: 1, 64>}, {pipeline_mode = #tpu.pipeline_mode<synchronous>, transform_indices = @transform_3, window_bounds = array<i64: 1, 64>}, {transform_indices = @transform_4, window_bounds = array<i64: 1, 8, 128>}, {transform_indices = @transform_5, window_bounds = array<i64: 1, 8, 128>}]} {
    %c0_i32 = arith.constant 0 : i32
    %0 = arith.cmpi eq, %arg1, %c0_i32 : i32
    %1 = arith.extui %0 : i1 to i32
    %c0_i32_0 = arith.constant 0 : i32
    %2 = arith.cmpi ne, %1, %c0_i32_0 : i32
    scf.if %2 {
      %cst_10 = arith.constant 0.000000e+00 : f32
      %15 = vector.broadcast %cst_10 : f32 to vector<8x256xf32>
      %c0_11 = arith.constant 0 : index
      %c0_12 = arith.constant 0 : index
      %16 = vector.load %arg8[%c0_11, %c0_12] : memref<8x256xf32, #tpu.memory_space<vmem>>, vector<8x256xf32>
      tpu.vector_store %arg8[%c0_11, %c0_12], %15 {strides = array<i32>} : memref<8x256xf32, #tpu.memory_space<vmem>>, vector<8x256xf32>,
    } else {
    }
    %c0 = arith.constant 0 : index
    %c0_1 = arith.constant 0 : index
    %3 = vector.load %arg2[%c0, %c0_1] : memref<8x256xf32, #tpu.memory_space<vmem>>, vector<8x256xf32>
    %c0_2 = arith.constant 0 : index
    %c0_3 = arith.constant 0 : index
    %4 = vector.load %arg3[%c0_2, %c0_3] : memref<8x256xf32, #tpu.memory_space<vmem>>, vector<8x256xf32>
    %5 = arith.subf %4, %3 : vector<8x256xf32>
    %6 = arith.mulf %5, %5 : vector<8x256xf32>
    %c0_4 = arith.constant 0 : index
    %c0_5 = arith.constant 0 : index
    %7 = vector.load %arg8[%c0_4, %c0_5] : memref<8x256xf32, #tpu.memory_space<vmem>>, vector<8x256xf32>
    %8 = vector.shape_cast %6 : vector<8x256xf32> to vector<1x8x256xf32>
    %cst = arith.constant dense<0.000000e+00> : vector<8x256xf32>
    %9 = vector.multi_reduction <add>, %8, %cst [0] : vector<1x8x256xf32> to vector<8x256xf32>
    %10 = arith.addf %7, %9 : vector<8x256xf32>
    %c0_6 = arith.constant 0 : index
    %c0_7 = arith.constant 0 : index
    %11 = vector.load %arg8[%c0_6, %c0_7] : memref<8x256xf32, #tpu.memory_space<vmem>>, vector<8x256xf32>
    tpu.vector_store %arg8[%c0_6, %c0_7], %10 {strides = array<i32>} : memref<8x256xf32, #tpu.memory_space<vmem>>, vector<8x256xf32>,
    %c0_i32_8 = arith.constant 0 : i32
    %12 = arith.cmpi eq, %arg1, %c0_i32_8 : i32
    %13 = arith.extui %12 : i1 to i32
    %c0_i32_9 = arith.constant 0 : i32
    %14 = arith.cmpi ne, %13, %c0_i32_9 : i32
    scf.if %14 {
      %c0_10 = arith.constant 0 : index
      %c0_11 = arith.constant 0 : index
      %15 = vector.load %arg8[%c0_10, %c0_11] : memref<8x256xf32, #tpu.memory_space<vmem>>, vector<8x256xf32>
      %16 = vector.shape_cast %15 : vector<8x256xf32> to vector<1x8x256xf32>
      %cst_12 = arith.constant dense<0.000000e+00> : vector<1xf32>
      %17 = vector.multi_reduction <add>, %16, %cst_12 [1, 2] : vector<1x8x256xf32> to vector<1xf32>
      %18 = vector.shape_cast %17 : vector<1xf32> to vector<1x1x1xf32>
      %19 = vector.extract %18[0, 0, 0] : f32 from vector<1x1x1xf32>
      %20 = vector.broadcast %19 : f32 to vector<1x8x128xf32>
      %c0_13 = arith.constant 0 : index
      %c0_14 = arith.constant 0 : index
      %c0_15 = arith.constant 0 : index
      %21 = vector.load %arg6[%c0_13, %c0_14, %c0_15] : memref<1x8x128xf32, #tpu.memory_space<vmem>>, vector<1x8x128xf32>
      tpu.vector_store %arg6[%c0_13, %c0_14, %c0_15], %20 {strides = array<i32>} : memref<1x8x128xf32, #tpu.memory_space<vmem>>, vector<1x8x128xf32>,
      %c0_16 = arith.constant 0 : index
      %c0_17 = arith.constant 0 : index
      %22 = vector.load %arg4[%c0_16, %c0_17] : memref<1x64xf32, #tpu.memory_space<vmem>>, vector<1x64xf32>
      %c0_18 = arith.constant 0 : index
      %c0_19 = arith.constant 0 : index
      %23 = vector.load %arg5[%c0_18, %c0_19] : memref<1x64xf32, #tpu.memory_space<vmem>>, vector<1x64xf32>
      %cst_20 = arith.constant 1.000000e+00 : f32
      %24 = vector.broadcast %cst_20 : f32 to vector<1x64xf32>
      %25 = arith.addf %24, %23 : vector<1x64xf32>
      %26 = arith.mulf %22, %22 : vector<1x64xf32>
      %27 = arith.subf %25, %26 : vector<1x64xf32>
      %28 = math.exp %23 : vector<1x64xf32>
      %29 = arith.subf %27, %28 : vector<1x64xf32>
      %30 = vector.shape_cast %29 : vector<1x64xf32> to vector<1x1x64xf32>
      %cst_21 = arith.constant dense<0.000000e+00> : vector<1xf32>
      %31 = vector.multi_reduction <add>, %30, %cst_21 [1, 2] : vector<1x1x64xf32> to vector<1xf32>
      %32 = vector.shape_cast %31 : vector<1xf32> to vector<1x1x1xf32>
      %33 = vector.extract %32[0, 0, 0] : f32 from vector<1x1x1xf32>
      %cst_22 = arith.constant -5.000000e-01 : f32
      %34 = arith.mulf %cst_22, %33 : f32
      %c0_i32_23 = arith.constant 0 : i32
      %35 = arith.cmpi eq, %arg0, %c0_i32_23 : i32
      %cst_24 = arith.constant 0.000000e+00 : f32
      %36 = arith.select %35, %34, %cst_24 : f32
      %37 = vector.broadcast %36 : f32 to vector<1x8x128xf32>
      %c0_25 = arith.constant 0 : index
      %c0_26 = arith.constant 0 : index
      %c0_27 = arith.constant 0 : index
      %38 = vector.load %arg7[%c0_25, %c0_26, %c0_27] : memref<1x8x128xf32, #tpu.memory_space<vmem>>, vector<1x8x128xf32>
      tpu.vector_store %arg7[%c0_25, %c0_26, %c0_27], %37 {strides = array<i32>} : memref<1x8x128xf32, #tpu.memory_space<vmem>>, vector<1x8x128xf32>,
    } else {
    }
    return
  }
  func.func @transform_0(%arg0: i32, %arg1: i32) -> (i32, i32) {
    %c1_i32 = arith.constant 1 : i32
    %0 = arith.muli %arg0, %c1_i32 : i32
    %1 = arith.addi %0, %arg1 : i32
    %c0_i32 = arith.constant 0 : i32
    %c0_i32_0 = arith.constant 0 : i32
    return %1, %c0_i32 : i32, i32
  }
  func.func @transform_1(%arg0: i32, %arg1: i32) -> (i32, i32) {
    %c1_i32 = arith.constant 1 : i32
    %0 = arith.muli %arg0, %c1_i32 : i32
    %1 = arith.addi %0, %arg1 : i32
    %c0_i32 = arith.constant 0 : i32
    %c0_i32_0 = arith.constant 0 : i32
    return %1, %c0_i32 : i32, i32
  }
  func.func @transform_2(%arg0: i32, %arg1: i32) -> (i32, i32) {
    %c0_i32 = arith.constant 0 : i32
    %c0_i32_0 = arith.constant 0 : i32
    %c0_i32_1 = arith.constant 0 : i32
    return %c0_i32, %c0_i32_0 : i32, i32
  }
  func.func @transform_3(%arg0: i32, %arg1: i32) -> (i32, i32) {
    %c0_i32 = arith.constant 0 : i32
    %c0_i32_0 = arith.constant 0 : i32
    %c0_i32_1 = arith.constant 0 : i32
    return %c0_i32, %c0_i32_0 : i32, i32
  }
  func.func @transform_4(%arg0: i32, %arg1: i32) -> (i32, i32, i32) {
    %c0_i32 = arith.constant 0 : i32
    %c0_i32_0 = arith.constant 0 : i32
    %c0_i32_1 = arith.constant 0 : i32
    return %arg0, %c0_i32, %c0_i32_0 : i32, i32, i32
  }
  func.func @transform_5(%arg0: i32, %arg1: i32) -> (i32, i32, i32) {
    %c0_i32 = arith.constant 0 : i32
    %c0_i32_0 = arith.constant 0 : i32
    %c0_i32_1 = arith.constant 0 : i32
    return %arg0, %c0_i32, %c0_i32_0 : i32, i32, i32
  }
}

</mosaic_0001>

<llo_original>
// kernel: vae_loss.1
$region0: #{vae_loss.1}
  #allocation0 [shape = 'u32[]', space=smem, size = 0x4, offset = 0x4, fixed_abs, tag = 'smem constant byte address 0x4 - core index']
  #allocation1 [shape = 'u32[144,128]{1,0:T(1,128)}', space=vmem, size = 0x12000, scoped, tag = 'internal scratch']
  #allocation2 [shape = 'f32[8,256]{1,0:T(8,128)}', space=vmem, size = 0x2000, scoped, tag = 'scratch operand']
  %s0 = inlined_call_operand.vmem [shape: f32[8,256], index: 0, kind: input, shape index: {}]
  %s1 = inlined_call_operand.vmem [shape: f32[8,256], index: 1, kind: input, shape index: {}]
  %s2 = inlined_call_operand.vmem [shape: f32[1,64], index: 2, kind: input, shape index: {}]
  %s3 = inlined_call_operand.vmem [shape: f32[1,64], index: 3, kind: input, shape index: {}]
  %s4 = inlined_call_operand.vmem [shape: f32[1,8,128], index: 4, kind: output, shape index: {0}]
  %s5 = inlined_call_operand.vmem [shape: f32[1,8,128], index: 5, kind: output, shape index: {1}]
  %6 = xla_tuple %s4, %s5
  %s7 = sld [smem:[#allocation0]]
  $region42: #{vae_loss.1} parent=0
    _
  %s9 = ssub.s32 1, %s7
  %s10 = scalar_select 0, %s9, %s7
  // Predicated region
  $region2: #{vae_loss.1} parent=0 // pred_check
    _
  $region3: #{vae_loss.1} parent=0 // pred_check_branch
    %12 = sbr.rel (0) target = $region5
  $region4: #{vae_loss.1} parent=0 // pred_region
    %s13 = sadd.s32 0, 0
    %p14 = scmp.lt.s32.totalorder %s13, 0
    %s15 = scalar_select %p14, %s13, 0
    %s16 = smul.addr %s15, 2
    %s17 = smul.addr %s16, 8
    %s18 = scalar_lea.vmem %s0, %s17
    %s19 = sadd.s32 0, 0
  $region5: #{vae_loss.1} parent=0 // pred_fallthru
    _
  // Predicated region
  $region6: #{vae_loss.1} parent=0 // pred_check
    _
  $region7: #{vae_loss.1} parent=0 // pred_check_branch
    %21 = sbr.rel (0) target = $region9
  $region8: #{vae_loss.1} parent=0 // pred_region
    %s22 = sadd.s32 0, 0
    %p23 = scmp.lt.s32.totalorder %s22, 0
    %s24 = scalar_select %p23, %s22, 0
    %s25 = smul.addr %s24, 2
    %s26 = smul.addr %s25, 8
    %s27 = scalar_lea.vmem %s1, %s26
    %s28 = sadd.s32 0, 0
  $region9: #{vae_loss.1} parent=0 // pred_fallthru
    _
  // Predicated region
  $region10: #{vae_loss.1} parent=0 // pred_check
    _
  $region11: #{vae_loss.1} parent=0 // pred_check_branch
    %30 = sbr.rel (0) target = $region13
  $region12: #{vae_loss.1} parent=0 // pred_region
    _
  $region13: #{vae_loss.1} parent=0 // pred_fallthru
    _
  // Predicated region
  $region14: #{vae_loss.1} parent=0 // pred_check
    _
  $region15: #{vae_loss.1} parent=0 // pred_check_branch
    %32 = sbr.rel (0) target = $region17
  $region16: #{vae_loss.1} parent=0 // pred_region
    _
  $region17: #{vae_loss.1} parent=0 // pred_fallthru
    _
  %s33 = sadd.s32 0, 0
  %p34 = scmp.lt.s32.totalorder %s33, 0
  %s35 = scalar_select %p34, %s33, 0
  %s36 = smul.addr %s35, 2
  %s37 = smul.addr %s36, 8
  %s38 = scalar_lea.vmem %s0, %s37
  %s39 = sadd.s32 0, 0
  %p40 = scmp.lt.s32.totalorder %s39, 0
  %s41 = scalar_select %p40, %s39, 0
  %s42 = smul.addr %s41, 2
  %s43 = smul.addr %s42, 8
  %s44 = scalar_lea.vmem %s1, %s43
  %s45 = sadd.s32 0, 0
  %p46 = scmp.lt.s32.totalorder %s45, 0
  %s47 = scalar_select %p46, %s45, 0
  %s48 = smul.addr %s47, 2
  %s49 = smul.addr %s48, 8
  %s50 = scalar_lea.vmem %s0, %s49
  %s51 = sadd.s32 0, 0
  %s52 = sadd.s32 0, 0
  %p53 = scmp.lt.s32.totalorder %s52, 0
  %s54 = scalar_select %p53, %s52, 0
  %s55 = smul.addr %s54, 2
  %s56 = smul.addr %s55, 8
  %s57 = scalar_lea.vmem %s1, %s56
  %s58 = sadd.s32 0, 0
  %p59 = scmp.eq.s32.totalorder 0, 0
  // Predicated region
  $region18: #{vae_loss.1} parent=0 // pred_check
    %p60 = pneg %p59
  $region19: #{vae_loss.1} parent=0 // pred_check_branch
    %62 = sbr.rel (%p60) target = $region21
  $region20: #{vae_loss.1} parent=0 // pred_region
    %63 = vst [vmem:[#allocation2] sm:$0xff] 0.0
    %64 = vst [vmem:[#allocation2 + $0x8] sm:$0xff] 0.0
  $region21: #{vae_loss.1} parent=0 // pred_fallthru
    _
  %v65 = vld [vmem:[%s50] sm:$0xff]
  %v66 = vld [vmem:[%s50 + $0x8] sm:$0xff]
  %v67 = vld [vmem:[%s57] sm:$0xff]
  %v68 = vld [vmem:[%s57 + $0x8] sm:$0xff]
  %v69 = vsub.f32 %v67, %v65
  %v70 = vsub.f32 %v68, %v66
  %v71 = vmul.f32 %v69, %v69
  %v72 = vmul.f32 %v70, %v70
  %v73 = vld [vmem:[#allocation2] sm:$0xff]
  %v74 = vld [vmem:[#allocation2 + $0x8] sm:$0xff]
  %v75 = vadd.f32 %v71, 0.0
  %v76 = vadd.f32 %v72, 0.0
  %v77 = vadd.f32 %v73, %v75
  %v78 = vadd.f32 %v74, %v76
  %79 = vst [vmem:[#allocation2] sm:$0xff] %v77
  %80 = vst [vmem:[#allocation2 + $0x8] sm:$0xff] %v78
  // Predicated region
  $region22: #{vae_loss.1} parent=0 // pred_check
    %p81 = pneg %p59
  $region23: #{vae_loss.1} parent=0 // pred_check_branch
    %83 = sbr.rel (%p81) target = $region25
  $region24: #{vae_loss.1} parent=0 // pred_region
    %v84 = vld [vmem:[#allocation2] sm:$0xff]
    %v85 = vld [vmem:[#allocation2 + $0x8] sm:$0xff]
    %v86 = vadd.f32 %v84, %v85
    %87 = vadd.xlane.f32.xlu0 %v86
    %v88 = vpop.xlane.xlu0 %87
    %v89 = vrot.slane %v88, 4
    %v90 = vadd.f32 %v88, %v89
    %v91 = vrot.slane %v90, 2
    %v92 = vadd.f32 %v90, %v91
    %v93 = vrot.slane %v92, 1
    %v94 = vadd.f32 %v92, %v93
    %s95 = vtos %v94
    %v96 = vstv %s95
    %97 = vst [vmem:[%s4] sm:$0xff] %v96
    %v98 = vld [vmem:[%s2] sm:$0x1]
    %v99 = vld [vmem:[%s3] sm:$0x1]
    %v100 = vadd.f32 %v99, 1.0
    %v101 = vmul.f32 %v98, %v98
    %v102 = vsub.f32 %v100, %v101
    %v103 = vmul.f32 %v99, 1.442695
    %v104 = vpow.pop %v103
    %v105 = vsub.f32 %v102, %v104
    %vm106 = vcmask 516096
    %v107 = vsel %vm106, %v105, 0.0
    %108 = vadd.xlane.f32.xlu0 %v107
    %v109 = vpop.xlane.xlu0 %108
    %v110 = vrot.slane %v109, 4
    %v111 = vadd.f32 %v109, %v110
    %v112 = vrot.slane %v111, 2
    %v113 = vadd.f32 %v111, %v112
    %v114 = vrot.slane %v113, 1
    %v115 = vadd.f32 %v113, %v114
    %s116 = vtos %v115
    %s117 = smul.f32 %s116, -0.5
    %p118 = scmp.eq.s32.totalorder 0, 0
    %s119 = scalar_select %p118, %s117, 0.0
    %v120 = vstv %s119
    %121 = vst [vmem:[%s5] sm:$0xff] %v120
  $region25: #{vae_loss.1} parent=0 // pred_fallthru
    _
  // Predicated region
  $region26: #{vae_loss.1} parent=0 // pred_check
    _
  $region27: #{vae_loss.1} parent=0 // pred_check_branch
    %123 = sbr.rel (0) target = $region29
  $region28: #{vae_loss.1} parent=0 // pred_region
    _
  $region29: #{vae_loss.1} parent=0 // pred_fallthru
    _
  // Predicated region
  $region30: #{vae_loss.1} parent=0 // pred_check
    _
  $region31: #{vae_loss.1} parent=0 // pred_check_branch
    %125 = sbr.rel (0) target = $region33
  $region32: #{vae_loss.1} parent=0 // pred_region
    _
  $region33: #{vae_loss.1} parent=0 // pred_fallthru
    _
  // Predicated region
  $region34: #{vae_loss.1} parent=0 // pred_check
    _
  $region35: #{vae_loss.1} parent=0 // pred_check_branch
    %127 = sbr.rel (0) target = $region37
  $region36: #{vae_loss.1} parent=0 // pred_region
    _
  $region37: #{vae_loss.1} parent=0 // pred_fallthru
    _
  // Predicated region
  $region38: #{vae_loss.1} parent=0 // pred_check
    _
  $region39: #{vae_loss.1} parent=0 // pred_check_branch
    %129 = sbr.rel (0) target = $region41
  $region40: #{vae_loss.1} parent=0 // pred_region
    _
  $region41: #{vae_loss.1} parent=0 // pred_fallthru
    _

</llo_original>
